<compile_context>
chip_gen: v7x
topology: tpu7x:2x2x1
jax: 0.10.0
libtpu: 0.0.40
codegen_flags: <defaults>
</compile_context>

<pallas_src>
import functools
from math import sqrt

import jax
import jax.numpy as jnp
from jax.experimental import pallas as pl
from jax.experimental.pallas import tpu as pltpu


def _residual_block_kernel(x_ref, halo_ref, wcat_ref, bdil_ref,
                           wproj_ref, bproj_ref, res_ref, skip_ref,
                           *, dilation, Tt, C, compute_dtype):
    d = dilation
    x_f32 = x_ref[0].astype(jnp.float32)           # (C, Tt) exact input tile
    xc = x_ref[0].astype(compute_dtype)            # MXU-operand precision
    halo = halo_ref[0, 0].astype(compute_dtype)    # (C, 2d) = [left_d | right_d]
    left, right = halo[:, :d], halo[:, d:]

    # Stack the 3 dilated taps along K -> (3C, Tt). Rows [k*C:(k+1)*C] hold the
    # input shifted by (k-1)*dilation, with the sequence-boundary zeros /
    # neighbour-tile columns supplied by the halo tensor.
    tap0 = jnp.concatenate([left, xc[:, :Tt - d]], axis=1)        # shift -d
    tap2 = jnp.concatenate([xc[:, d:], right], axis=1)            # shift +d
    xstack = jnp.concatenate([tap0, xc, tap2], axis=0)            # (3C, Tt)

    # Dilated conv as one K=3C matmul; bias added after the matmul.
    y = jnp.dot(wcat_ref[...], xstack,
                preferred_element_type=jnp.float32)               # (2C, Tt) f32
    y = y + bdil_ref[...]

    # Gated activation (torch.chunk(y, 2, dim=1)) — elementwise in f32.
    gate, filt = y[:C, :], y[C:, :]
    z = jax.nn.sigmoid(gate) * jnp.tanh(filt)                     # (C, Tt) f32

    # 1x1 output projection.
    y2 = jnp.dot(wproj_ref[...], z.astype(compute_dtype),
                 preferred_element_type=jnp.float32)              # (2C, Tt)
    y2 = y2 + bproj_ref[...]

    res_ref[0] = ((x_f32 + y2[:C, :]) * (1.0 / sqrt(2.0))).astype(res_ref.dtype)
    skip_ref[0] = y2[C:, :].astype(skip_ref.dtype)


def _choose_time_tile(T, dilation):
    """Largest lane-dense tile that divides T and strictly exceeds dilation."""
    for cand in (1024, 512, 256, 128):
        if T % cand == 0 and dilation < cand:
            return cand
    return T


def residual_block(x, w_dil, b_dil, w_proj, b_proj, *, dilation,
                   compute_dtype=jnp.bfloat16, time_tile=None):
    """x: (B, C, T) f32; returns ((x + residual)/sqrt(2), skip), each (B, C, T)."""
    B, C, T = x.shape
    d = int(dilation)
    assert 1 <= d < T, "dilation must satisfy 1 <= dilation < T"

    if time_tile is None:
        Tt = _choose_time_tile(T, d)
    else:
        Tt = int(time_tile)
        assert T % Tt == 0 and d < Tt, "time_tile must divide T and exceed dilation"
    n_t = T // Tt

    # --- per-tile halos: the 2*dilation neighbour columns each tile's dilated
    #     taps need (zeros at the sequence boundaries).  Shape (B, n_t, C, 2d).
    #     This replaces padding / rewriting the full sequence in HBM.
    xr = x.reshape(B, C, n_t, Tt)
    zhalo = jnp.zeros((B, C, 1, d), x.dtype)
    left = jnp.concatenate([zhalo, xr[:, :, :-1, Tt - d:]], axis=2)   # (B,C,n_t,d)
    right = jnp.concatenate([xr[:, :, 1:, :d], zhalo], axis=2)        # (B,C,n_t,d)
    halos = jnp.transpose(jnp.concatenate([left, right], axis=-1),
                          (0, 2, 1, 3))                               # (B,n_t,C,2d)

    # --- lane-dense weights: conv taps concatenated along K -> (2C, 3C).
    w_cat = jnp.concatenate([w_dil[:, :, k] for k in range(3)],
                            axis=1).astype(compute_dtype)             # (2C, 3C)
    w_prj = w_proj[:, :, 0].astype(compute_dtype)                     # (2C, C)
    b_dil2 = b_dil.reshape(2 * C, 1).astype(jnp.float32)
    b_prj2 = b_proj.reshape(2 * C, 1).astype(jnp.float32)

    kernel = functools.partial(_residual_block_kernel, dilation=d, Tt=Tt, C=C,
                               compute_dtype=compute_dtype)

    # Scoped-VMEM budget sized to the chosen tiles (with pipelining headroom),
    # clamped to stay inside every generation's physical VMEM.
    cbytes = jnp.dtype(compute_dtype).itemsize
    xbytes = x.dtype.itemsize
    block_bytes = (C * Tt * xbytes + C * 2 * d * xbytes          # x tile + halo
                   + 2 * C * 3 * C * cbytes + 2 * C * C * cbytes  # weights
                   + 2 * (2 * C) * 4                              # biases
                   + 2 * C * Tt * xbytes)                         # two outputs
    vmem_limit = int(min(48 * 1024 * 1024,
                         max(32 * 1024 * 1024, 8 * block_bytes)))

    cost = pl.CostEstimate(
        flops=int(2 * B * T * (2 * C) * (3 * C + C)),
        transcendentals=int(2 * B * C * T),
        bytes_accessed=int(x.size * xbytes + halos.size * xbytes
                           + w_cat.size * cbytes + w_prj.size * cbytes
                           + 4 * 4 * C + 2 * B * C * T * xbytes))

    out_shapes = (jax.ShapeDtypeStruct((B, C, T), x.dtype),
                  jax.ShapeDtypeStruct((B, C, T), x.dtype))

    return pl.pallas_call(
        kernel,
        out_shape=out_shapes,
        grid_spec=pltpu.PrefetchScalarGridSpec(
            num_scalar_prefetch=0,
            grid=(B, n_t),
            in_specs=[
                pl.BlockSpec((1, C, Tt), lambda b, t: (b, 0, t)),          # x
                pl.BlockSpec((1, 1, C, 2 * d), lambda b, t: (b, t, 0, 0)),  # halo
                pl.BlockSpec((2 * C, 3 * C), lambda b, t: (0, 0)),          # w_cat
                pl.BlockSpec((2 * C, 1), lambda b, t: (0, 0)),              # b_dil
                pl.BlockSpec((2 * C, C), lambda b, t: (0, 0)),              # w_proj
                pl.BlockSpec((2 * C, 1), lambda b, t: (0, 0)),              # b_proj
            ],
            out_specs=(pl.BlockSpec((1, C, Tt), lambda b, t: (b, 0, t)),
                       pl.BlockSpec((1, C, Tt), lambda b, t: (b, 0, t))),
        ),
        compiler_params=pltpu.CompilerParams(
            dimension_semantics=("parallel", "parallel"),
            vmem_limit_bytes=vmem_limit),
        cost_estimate=cost,
    )(x, halos, w_cat, b_dil2, w_prj, b_prj2)


def residual_block_ref(x, w_dil, b_dil, w_proj, b_proj, *, dilation):
    """Plain-JAX reference mirroring the PyTorch forward pass."""
    B, C, T = x.shape
    xp = jnp.pad(x, ((0, 0), (0, 0), (dilation, dilation)))
    y = b_dil[None, :, None]
    for k in range(3):
        tap = xp[:, :, k * dilation: k * dilation + T]
        y = y + jnp.einsum('oc,bct->bot', w_dil[:, :, k], tap)
    gate, filt = y[:, :C, :], y[:, C:, :]
    z = jax.nn.sigmoid(gate) * jnp.tanh(filt)
    y2 = jnp.einsum('oc,bct->bot', w_proj[:, :, 0], z) + b_proj[None, :, None]
    residual, skip = y2[:, :C, :], y2[:, C:, :]
    return (x + residual) / sqrt(2.0), skip


def _make_inputs(key, B, C, T):
    kx, kw1, kb1, kw2, kb2 = jax.random.split(key, 5)
    x = jax.random.normal(kx, (B, C, T), jnp.float32)
    fan_dil = C * 3
    w_dil = jax.random.normal(kw1, (2 * C, C, 3), jnp.float32) * jnp.sqrt(2.0 / fan_dil)
    b_dil = jax.random.uniform(kb1, (2 * C,), jnp.float32,
                               -1.0 / jnp.sqrt(fan_dil), 1.0 / jnp.sqrt(fan_dil))
    fan_proj = C
    w_proj = jax.random.normal(kw2, (2 * C, C, 1), jnp.float32) * jnp.sqrt(2.0 / fan_proj)
    b_proj = jax.random.uniform(kb2, (2 * C,), jnp.float32,
                                -1.0 / jnp.sqrt(fan_proj), 1.0 / jnp.sqrt(fan_proj))
    return x, w_dil, b_dil, w_proj, b_proj


def _check(pallas_out, ref_out, atol, rtol, name):
    res, skip = pallas_out
    res = jax.block_until_ready(res)
    skip = jax.block_until_ready(skip)
    res_r, skip_r = ref_out
    assert jnp.allclose(res, res_r, atol=atol, rtol=rtol), f"{name}: residual mismatch"
    assert jnp.allclose(skip, skip_r, atol=atol, rtol=rtol), f"{name}: skip mismatch"


if __name__ == "__main__":
    key = jax.random.PRNGKey(0)
    k1, k2 = jax.random.split(key)

    # --- small config (single time tile), matching the module's toy shapes ---
    B, C, T, dil = 2, 4, 16, 2
    x, w_dil, b_dil, w_proj, b_proj = _make_inputs(k1, B, C, T)
    ref = residual_block_ref(x, w_dil, b_dil, w_proj, b_proj, dilation=dil)

    out_f32 = residual_block(x, w_dil, b_dil, w_proj, b_proj, dilation=dil,
                             compute_dtype=jnp.float32)
    _check(out_f32, ref, atol=1e-5, rtol=1e-5, name="small f32")

    out_bf16 = residual_block(x, w_dil, b_dil, w_proj, b_proj, dilation=dil)
    _check(out_bf16, ref, atol=1e-1, rtol=1e-1, name="small bf16")

    # --- larger config exercising the time-tiled + halo path (n_t = 4) ---
    B2, C2, T2, dil2 = 2, 8, 512, 4
    x2, w_dil2, b_dil2, w_proj2, b_proj2 = _make_inputs(k2, B2, C2, T2)
    ref2 = residual_block_ref(x2, w_dil2, b_dil2, w_proj2, b_proj2, dilation=dil2)

    out2_f32 = residual_block(x2, w_dil2, b_dil2, w_proj2, b_proj2, dilation=dil2,
                              compute_dtype=jnp.float32, time_tile=128)
    _check(out2_f32, ref2, atol=1e-3, rtol=1e-3, name="tiled f32")

    out2_bf16 = residual_block(x2, w_dil2, b_dil2, w_proj2, b_proj2, dilation=dil2,
                               time_tile=128)
    _check(out2_bf16, ref2, atol=1e-1, rtol=1e-1, name="tiled bf16")

    print("KERNEL_OK")
</pallas_src>

<mosaic_0001>
module attributes {stable_mosaic.version = 11 : i64} {
  func.func @_residual_block_kernel(%arg0: i32, %arg1: i32, %arg2: memref<1x4x16xf32, #tpu.memory_space<vmem>>, %arg3: memref<1x1x4x4xf32, #tpu.memory_space<vmem>>, %arg4: memref<8x12xf32, #tpu.memory_space<vmem>>, %arg5: memref<8x1xf32, #tpu.memory_space<vmem>>, %arg6: memref<8x4xf32, #tpu.memory_space<vmem>>, %arg7: memref<8x1xf32, #tpu.memory_space<vmem>>, %arg8: memref<1x4x16xf32, #tpu.memory_space<vmem>>, %arg9: memref<1x4x16xf32, #tpu.memory_space<vmem>>) attributes {dimension_semantics = [#tpu.dimension_semantics<parallel>, #tpu.dimension_semantics<parallel>], iteration_bounds = array<i64: 2, 1>, scalar_prefetch = 0 : i64, scratch_operands = 0 : i64, tpu.core_type = #tpu.core_type<tc>, window_params = [{transform_indices = @transform_0, window_bounds = array<i64: 1, 4, 16>}, {transform_indices = @transform_1, window_bounds = array<i64: 1, 1, 4, 4>}, {pipeline_mode = #tpu.pipeline_mode<synchronous>, transform_indices = @transform_2, window_bounds = array<i64: 8, 12>}, {pipeline_mode = #tpu.pipeline_mode<synchronous>, transform_indices = @transform_3, window_bounds = array<i64: 8, 1>}, {pipeline_mode = #tpu.pipeline_mode<synchronous>, transform_indices = @transform_4, window_bounds = array<i64: 8, 4>}, {pipeline_mode = #tpu.pipeline_mode<synchronous>, transform_indices = @transform_5, window_bounds = array<i64: 8, 1>}, {transform_indices = @transform_6, window_bounds = array<i64: 1, 4, 16>}, {transform_indices = @transform_7, window_bounds = array<i64: 1, 4, 16>}]} {
    %c0 = arith.constant 0 : index
    %c0_0 = arith.constant 0 : index
    %c0_1 = arith.constant 0 : index
    %0 = vector.load %arg2[%c0, %c0_0, %c0_1] : memref<1x4x16xf32, #tpu.memory_space<vmem>>, vector<1x4x16xf32>
    %1 = vector.shape_cast %0 : vector<1x4x16xf32> to vector<4x16xf32>
    %c0_2 = arith.constant 0 : index
    %c0_3 = arith.constant 0 : index
    %c0_4 = arith.constant 0 : index
    %2 = vector.load %arg2[%c0_2, %c0_3, %c0_4] : memref<1x4x16xf32, #tpu.memory_space<vmem>>, vector<1x4x16xf32>
    %3 = vector.shape_cast %2 : vector<1x4x16xf32> to vector<4x16xf32>
    %c0_5 = arith.constant 0 : index
    %c0_6 = arith.constant 0 : index
    %c0_7 = arith.constant 0 : index
    %c0_8 = arith.constant 0 : index
    %4 = vector.load %arg3[%c0_5, %c0_6, %c0_7, %c0_8] : memref<1x1x4x4xf32, #tpu.memory_space<vmem>>, vector<1x1x4x4xf32>
    %5 = vector.shape_cast %4 : vector<1x1x4x4xf32> to vector<4x4xf32>
    %6 = vector.extract_strided_slice %5 {offsets = [0, 0], sizes = [4, 2], strides = [1, 1]} : vector<4x4xf32> to vector<4x2xf32>
    %7 = vector.extract_strided_slice %5 {offsets = [0, 2], sizes = [4, 2], strides = [1, 1]} : vector<4x4xf32> to vector<4x2xf32>
    %8 = vector.extract_strided_slice %3 {offsets = [0, 0], sizes = [4, 14], strides = [1, 1]} : vector<4x16xf32> to vector<4x14xf32>
    %9 = tpu.concatenate %6, %8 in 1 : vector<4x2xf32>, vector<4x14xf32> -> vector<4x16xf32>
    %10 = vector.extract_strided_slice %3 {offsets = [0, 2], sizes = [4, 14], strides = [1, 1]} : vector<4x16xf32> to vector<4x14xf32>
    %11 = tpu.concatenate %10, %7 in 1 : vector<4x14xf32>, vector<4x2xf32> -> vector<4x16xf32>
    %12 = tpu.concatenate %9, %3, %11 in 0 : vector<4x16xf32>, vector<4x16xf32>, vector<4x16xf32> -> vector<12x16xf32>
    %c0_9 = arith.constant 0 : index
    %c0_10 = arith.constant 0 : index
    %13 = vector.load %arg4[%c0_9, %c0_10] : memref<8x12xf32, #tpu.memory_space<vmem>>, vector<8x12xf32>
    %cst = arith.constant dense<0.000000e+00> : vector<8x16xf32>
    %14 = tpu.matmul %13, %12, %cst {dimension_numbers = #tpu.dot_dimension_numbers<[1], [0], [0], [1], [0, 0, 1, 1], [], []>} : vector<8x12xf32>, vector<12x16xf32>, vector<8x16xf32> -> vector<8x16xf32>
    %c0_11 = arith.constant 0 : index
    %c0_12 = arith.constant 0 : index
    %15 = vector.load %arg5[%c0_11, %c0_12] : memref<8x1xf32, #tpu.memory_space<vmem>>, vector<8x1xf32>
    %16 = vector.broadcast %15 : vector<8x1xf32> to vector<8x16xf32>
    %17 = arith.addf %14, %16 : vector<8x16xf32>
    %18 = vector.extract_strided_slice %17 {offsets = [0, 0], sizes = [4, 16], strides = [1, 1]} : vector<8x16xf32> to vector<4x16xf32>
    %19 = vector.extract_strided_slice %17 {offsets = [4, 0], sizes = [4, 16], strides = [1, 1]} : vector<8x16xf32> to vector<4x16xf32>
    %20 = arith.negf %18 : vector<4x16xf32>
    %21 = math.exp %20 : vector<4x16xf32>
    %cst_13 = arith.constant 1.000000e+00 : f32
    %22 = vector.broadcast %cst_13 : f32 to vector<4x16xf32>
    %23 = arith.addf %22, %21 : vector<4x16xf32>
    %24 = arith.divf %22, %23 : vector<4x16xf32>
    %25 = math.tanh %19 : vector<4x16xf32>
    %26 = arith.mulf %24, %25 : vector<4x16xf32>
    %c0_14 = arith.constant 0 : index
    %c0_15 = arith.constant 0 : index
    %27 = vector.load %arg6[%c0_14, %c0_15] : memref<8x4xf32, #tpu.memory_space<vmem>>, vector<8x4xf32>
    %cst_16 = arith.constant dense<0.000000e+00> : vector<8x16xf32>
    %28 = tpu.matmul %27, %26, %cst_16 {dimension_numbers = #tpu.dot_dimension_numbers<[1], [0], [0], [1], [0, 0, 1, 1], [], []>} : vector<8x4xf32>, vector<4x16xf32>, vector<8x16xf32> -> vector<8x16xf32>
    %c0_17 = arith.constant 0 : index
    %c0_18 = arith.constant 0 : index
    %29 = vector.load %arg7[%c0_17, %c0_18] : memref<8x1xf32, #tpu.memory_space<vmem>>, vector<8x1xf32>
    %30 = vector.broadcast %29 : vector<8x1xf32> to vector<8x16xf32>
    %31 = arith.addf %28, %30 : vector<8x16xf32>
    %32 = vector.extract_strided_slice %31 {offsets = [0, 0], sizes = [4, 16], strides = [1, 1]} : vector<8x16xf32> to vector<4x16xf32>
    %33 = arith.addf %1, %32 : vector<4x16xf32>
    %cst_19 = arith.constant 0.707106769 : f32
    %34 = vector.broadcast %cst_19 : f32 to vector<4x16xf32>
    %35 = arith.mulf %33, %34 : vector<4x16xf32>
    %c0_20 = arith.constant 0 : index
    %c0_21 = arith.constant 0 : index
    %c0_22 = arith.constant 0 : index
    %36 = vector.load %arg8[%c0_20, %c0_21, %c0_22] : memref<1x4x16xf32, #tpu.memory_space<vmem>>, vector<1x4x16xf32>
    %37 = vector.shape_cast %36 : vector<1x4x16xf32> to vector<4x16xf32>
    %38 = vector.shape_cast %35 : vector<4x16xf32> to vector<1x4x16xf32>
    tpu.vector_store %arg8[%c0_20, %c0_21, %c0_22], %38 {strides = array<i32>} : memref<1x4x16xf32, #tpu.memory_space<vmem>>, vector<1x4x16xf32>,
    %39 = vector.extract_strided_slice %31 {offsets = [4, 0], sizes = [4, 16], strides = [1, 1]} : vector<8x16xf32> to vector<4x16xf32>
    %c0_23 = arith.constant 0 : index
    %c0_24 = arith.constant 0 : index
    %c0_25 = arith.constant 0 : index
    %40 = vector.load %arg9[%c0_23, %c0_24, %c0_25] : memref<1x4x16xf32, #tpu.memory_space<vmem>>, vector<1x4x16xf32>
    %41 = vector.shape_cast %40 : vector<1x4x16xf32> to vector<4x16xf32>
    %42 = vector.shape_cast %39 : vector<4x16xf32> to vector<1x4x16xf32>
    tpu.vector_store %arg9[%c0_23, %c0_24, %c0_25], %42 {strides = array<i32>} : memref<1x4x16xf32, #tpu.memory_space<vmem>>, vector<1x4x16xf32>,
    return
  }
  func.func @transform_0(%arg0: i32, %arg1: i32) -> (i32, i32, i32) {
    %c0_i32 = arith.constant 0 : i32
    %c0_i32_0 = arith.constant 0 : i32
    return %arg0, %c0_i32, %arg1 : i32, i32, i32
  }
  func.func @transform_1(%arg0: i32, %arg1: i32) -> (i32, i32, i32, i32) {
    %c0_i32 = arith.constant 0 : i32
    %c0_i32_0 = arith.constant 0 : i32
    %c0_i32_1 = arith.constant 0 : i32
    return %arg0, %arg1, %c0_i32, %c0_i32_0 : i32, i32, i32, i32
  }
  func.func @transform_2(%arg0: i32, %arg1: i32) -> (i32, i32) {
    %c0_i32 = arith.constant 0 : i32
    %c0_i32_0 = arith.constant 0 : i32
    %c0_i32_1 = arith.constant 0 : i32
    return %c0_i32, %c0_i32_0 : i32, i32
  }
  func.func @transform_3(%arg0: i32, %arg1: i32) -> (i32, i32) {
    %c0_i32 = arith.constant 0 : i32
    %c0_i32_0 = arith.constant 0 : i32
    %c0_i32_1 = arith.constant 0 : i32
    return %c0_i32, %c0_i32_0 : i32, i32
  }
  func.func @transform_4(%arg0: i32, %arg1: i32) -> (i32, i32) {
    %c0_i32 = arith.constant 0 : i32
    %c0_i32_0 = arith.constant 0 : i32
    %c0_i32_1 = arith.constant 0 : i32
    return %c0_i32, %c0_i32_0 : i32, i32
  }
  func.func @transform_5(%arg0: i32, %arg1: i32) -> (i32, i32) {
    %c0_i32 = arith.constant 0 : i32
    %c0_i32_0 = arith.constant 0 : i32
    %c0_i32_1 = arith.constant 0 : i32
    return %c0_i32, %c0_i32_0 : i32, i32
  }
  func.func @transform_6(%arg0: i32, %arg1: i32) -> (i32, i32, i32) {
    %c0_i32 = arith.constant 0 : i32
    %c0_i32_0 = arith.constant 0 : i32
    return %arg0, %c0_i32, %arg1 : i32, i32, i32
  }
  func.func @transform_7(%arg0: i32, %arg1: i32) -> (i32, i32, i32) {
    %c0_i32 = arith.constant 0 : i32
    %c0_i32_0 = arith.constant 0 : i32
    return %arg0, %c0_i32, %arg1 : i32, i32, i32
  }
}

</mosaic_0001>

<llo_original>
// kernel: tpu_custom_call.1
$region0: #{tpu_custom_call.1}
  #allocation0 [shape = 'u32[]', space=smem, size = 0x4, offset = 0x4, fixed_abs, tag = 'smem constant byte address 0x4 - core index']
  #allocation1 [shape = 'u32[144,128]{1,0:T(1,128)}', space=vmem, size = 0x12000, scoped, tag = 'internal scratch']
  %s0 = inlined_call_operand.vmem [shape: f32[2,4,16], index: 0, kind: input, shape index: {}]
  %s1 = inlined_call_operand.vmem [shape: f32[2,1,4,4], index: 1, kind: input, shape index: {}]
  %s2 = inlined_call_operand.vmem [shape: f32[8,12], index: 2, kind: input, shape index: {}]
  %s3 = inlined_call_operand.vmem [shape: f32[8,1], index: 3, kind: input, shape index: {}]
  %s4 = inlined_call_operand.vmem [shape: f32[8,4], index: 4, kind: input, shape index: {}]
  %s5 = inlined_call_operand.vmem [shape: f32[8,1], index: 5, kind: input, shape index: {}]
  %s6 = inlined_call_operand.hbm [shape: f32[2,4,16], index: 6, kind: output, shape index: {0}]
  %s7 = inlined_call_operand.hbm [shape: f32[2,4,16], index: 7, kind: output, shape index: {1}]
  %8 = xla_tuple %s6, %s7
  %s9 = sld [smem:[#allocation0]]
  $region65: #{tpu_custom_call.1} parent=0
    _
  %s11 = ssub.s32 1, %s9
  %s12 = scalar_select 0, %s11, %s9
  $region1: #{tpu_custom_call.1} parent=0
    #allocation2 [shape = 'u8[4096]{0}', space=vmem, size = 0x1000, scoped, tag = 'output window, operand 0']
    #allocation3 [shape = 's32[2]{0}', space=sflag, size = 0x8, scoped, tag = 'scoped memory for tpu_custom_call.1']
    #allocation4 [shape = 'u8[4096]{0}', space=vmem, size = 0x1000, scoped, tag = 'output window, operand 1']
    #allocation5 [shape = 's32[2]{0}', space=sflag, size = 0x8, scoped, tag = 'scoped memory for tpu_custom_call.1']
    %13 = vsyncpa [#allocation3], 0
    %s14 = scalar_lea.sflag [#allocation3], 1
    %15 = vsyncpa %s14, 0
    %16 = vsyncpa [#allocation5], 0
    %s17 = scalar_lea.sflag [#allocation5], 1
    %18 = vsyncpa %s17, 0
    loop: start=0, step=1, limit=4
    $region2: #{tpu_custom_call.1} parent=1 // loop_pre_header
      _
    $region3: #{tpu_custom_call.1} parent=1 // loop_header
      %s20 = sphi 0, %s24
      %p21 = scmp.ge.s32.totalorder %s20, 4
      %s27 = sphi 0, %s39
      %s28 = sphi 0, %s35
      %s29 = sphi 0, %s27
      %s30 = sphi 0, %s28
      %s31 = sphi 0, %s29
      %s32 = sphi 0, %s30
      %s44 = sphi 0, %s46
      %s47 = sphi 0, %s44
      %s48 = sphi 0, %s47
      %s64 = sphi 0, %s48
      %s72 = sphi 0, %s74
      %s75 = sphi 0, %s72
      %s76 = sphi 0, %s75
      %s92 = sphi 0, %s76
      %s96 = sphi 0, %s96
      %s98 = sphi 0, %s96
      %s99 = sphi 0, %s98
      %s113 = sphi 0, %s99
      %s117 = sphi 0, %s117
      %s119 = sphi 0, %s117
      %s120 = sphi 0, %s119
      %s134 = sphi 0, %s120
      %s138 = sphi 0, %s138
      %s140 = sphi 0, %s138
      %s141 = sphi 0, %s140
      %s155 = sphi 0, %s141
      %s159 = sphi 0, %s159
      %s161 = sphi 0, %s159
      %s162 = sphi 0, %s161
      %s176 = sphi 0, %s162
      %s184 = sphi 0, %s186
      %s187 = sphi 0, %s184
      %s188 = sphi 0, %s187
      %s204 = sphi 0, %s188
      %s212 = sphi 0, %s214
      %s215 = sphi 0, %s212
      %s216 = sphi 0, %s215
      %s232 = sphi 0, %s216
    $region4: #{tpu_custom_call.1} parent=1 // loop_header_branch
      %23 = sbr.rel (%p21) target = $region8
    $region5: #{tpu_custom_call.1} parent=1 // loop_body
      %s25 = ssub.s32 %s20, 1
      %s26 = ssub.s32 %s20, 2
      %s33 = sadd.s32 1, %s28
      %p34 = scmp.ge.s32.totalorder %s33, 1
      %s35 = scalar_select %p34, 0, %s33
      %s36 = sadd.s32 1, %s27
      %s37 = scalar_select %p34, %s36, %s27
      %p38 = scmp.ge.s32.totalorder %s37, 2
      %s39 = scalar_select %p38, 0, %s37
      %s40 = ssub.s32 %s27, %s39
      %s41 = ssub.s32 %s28, %s35
      %s42 = sor.u32 %s40, %s41
      %p43 = scmp.eq.s32.totalorder %s42, 0
      %s45 = sadd.s32 %s44, 1
      %s46 = scalar_select %p43, %s44, %s45
      %p49 = pneg %p43
      %p50 = scmp.eq.s32.totalorder %s20, 1
      %p51 = por %p49, %p50
      %p52 = scmp.ne.s32.totalorder %s44, %s47
      %p53 = scmp.eq.s32.totalorder %s20, 0
      %p54 = por %p52, %p53
      %p55 = scmp.ne.s32.totalorder %s44, %s47
      %p56 = scmp.eq.s32.totalorder %s25, 1
      %p57 = por %p55, %p56
      %p58 = scmp.ne.s32.totalorder %s47, %s48
      %p59 = scmp.eq.s32.totalorder %s25, 0
      %p60 = por %p58, %p59
      %p61 = scmp.ne.s32.totalorder %s47, %s48
      %p62 = scmp.eq.s32.totalorder %s26, 1
      %p63 = por %p61, %p62
      %p65 = scmp.ne.s32.totalorder %s48, %s64
      %p66 = scmp.eq.s32.totalorder %s26, 0
      %p67 = por %p65, %p66
      %s68 = ssub.s32 %s27, %s39
      %s69 = ssub.s32 %s28, %s35
      %s70 = sor.u32 %s68, %s69
      %p71 = scmp.eq.s32.totalorder %s70, 0
      %s73 = sadd.s32 %s72, 1
      %s74 = scalar_select %p71, %s72, %s73
      %p77 = pneg %p71
      %p78 = scmp.eq.s32.totalorder %s20, 1
      %p79 = por %p77, %p78
      %p80 = scmp.ne.s32.totalorder %s72, %s75
      %p81 = scmp.eq.s32.totalorder %s20, 0
      %p82 = por %p80, %p81
      %p83 = scmp.ne.s32.totalorder %s72, %s75
      %p84 = scmp.eq.s32.totalorder %s25, 1
      %p85 = por %p83, %p84
      %p86 = scmp.ne.s32.totalorder %s75, %s76
      %p87 = scmp.eq.s32.totalorder %s25, 0
      %p88 = por %p86, %p87
      %p89 = scmp.ne.s32.totalorder %s75, %s76
      %p90 = scmp.eq.s32.totalorder %s26, 1
      %p91 = por %p89, %p90
      %p93 = scmp.ne.s32.totalorder %s76, %s92
      %p94 = scmp.eq.s32.totalorder %s26, 0
      %p95 = por %p93, %p94
      %s97 = sadd.s32 %s96, 1
      %p100 = scmp.eq.s32.totalorder %s20, 1
      %p101 = scmp.ne.s32.totalorder %s96, %s98
      %p102 = scmp.eq.s32.totalorder %s20, 0
      %p103 = por %p101, %p102
      %p104 = scmp.ne.s32.totalorder %s96, %s98
      %p105 = scmp.eq.s32.totalorder %s25, 1
      %p106 = por %p104, %p105
      %p107 = scmp.ne.s32.totalorder %s98, %s99
      %p108 = scmp.eq.s32.totalorder %s25, 0
      %p109 = por %p107, %p108
      %p110 = scmp.ne.s32.totalorder %s98, %s99
      %p111 = scmp.eq.s32.totalorder %s26, 1
      %p112 = por %p110, %p111
      %p114 = scmp.ne.s32.totalorder %s99, %s113
      %p115 = scmp.eq.s32.totalorder %s26, 0
      %p116 = por %p114, %p115
      %s118 = sadd.s32 %s117, 1
      %p121 = scmp.eq.s32.totalorder %s20, 1
      %p122 = scmp.ne.s32.totalorder %s117, %s119
      %p123 = scmp.eq.s32.totalorder %s20, 0
      %p124 = por %p122, %p123
      %p125 = scmp.ne.s32.totalorder %s117, %s119
      %p126 = scmp.eq.s32.totalorder %s25, 1
      %p127 = por %p125, %p126
      %p128 = scmp.ne.s32.totalorder %s119, %s120
      %p129 = scmp.eq.s32.totalorder %s25, 0
      %p130 = por %p128, %p129
      %p131 = scmp.ne.s32.totalorder %s119, %s120
      %p132 = scmp.eq.s32.totalorder %s26, 1
      %p133 = por %p131, %p132
      %p135 = scmp.ne.s32.totalorder %s120, %s134
      %p136 = scmp.eq.s32.totalorder %s26, 0
      %p137 = por %p135, %p136
      %s139 = sadd.s32 %s138, 1
      %p142 = scmp.eq.s32.totalorder %s20, 1
      %p143 = scmp.ne.s32.totalorder %s138, %s140
      %p144 = scmp.eq.s32.totalorder %s20, 0
      %p145 = por %p143, %p144
      %p146 = scmp.ne.s32.totalorder %s138, %s140
      %p147 = scmp.eq.s32.totalorder %s25, 1
      %p148 = por %p146, %p147
      %p149 = scmp.ne.s32.totalorder %s140, %s141
      %p150 = scmp.eq.s32.totalorder %s25, 0
      %p151 = por %p149, %p150
      %p152 = scmp.ne.s32.totalorder %s140, %s141
      %p153 = scmp.eq.s32.totalorder %s26, 1
      %p154 = por %p152, %p153
      %p156 = scmp.ne.s32.totalorder %s141, %s155
      %p157 = scmp.eq.s32.totalorder %s26, 0
      %p158 = por %p156, %p157
      %s160 = sadd.s32 %s159, 1
      %p163 = scmp.eq.s32.totalorder %s20, 1
      %p164 = scmp.ne.s32.totalorder %s159, %s161
      %p165 = scmp.eq.s32.totalorder %s20, 0
      %p166 = por %p164, %p165
      %p167 = scmp.ne.s32.totalorder %s159, %s161
      %p168 = scmp.eq.s32.totalorder %s25, 1
      %p169 = por %p167, %p168
      %p170 = scmp.ne.s32.totalorder %s161, %s162
      %p171 = scmp.eq.s32.totalorder %s25, 0
      %p172 = por %p170, %p171
      %p173 = scmp.ne.s32.totalorder %s161, %s162
      %p174 = scmp.eq.s32.totalorder %s26, 1
      %p175 = por %p173, %p174
      %p177 = scmp.ne.s32.totalorder %s162, %s176
      %p178 = scmp.eq.s32.totalorder %s26, 0
      %p179 = por %p177, %p178
      %s180 = ssub.s32 %s27, %s39
      %s181 = ssub.s32 %s28, %s35
      %s182 = sor.u32 %s180, %s181
      %p183 = scmp.eq.s32.totalorder %s182, 0
      %s185 = sadd.s32 %s184, 1
      %s186 = scalar_select %p183, %s184, %s185
      %p189 = pneg %p183
      %p190 = scmp.eq.s32.totalorder %s20, 1
      %p191 = por %p189, %p190
      %p192 = scmp.ne.s32.totalorder %s184, %s187
      %p193 = scmp.eq.s32.totalorder %s20, 0
      %p194 = por %p192, %p193
      %p195 = scmp.ne.s32.totalorder %s184, %s187
      %p196 = scmp.eq.s32.totalorder %s25, 1
      %p197 = por %p195, %p196
      %p198 = scmp.ne.s32.totalorder %s187, %s188
      %p199 = scmp.eq.s32.totalorder %s25, 0
      %p200 = por %p198, %p199
      %p201 = scmp.ne.s32.totalorder %s187, %s188
      %p202 = scmp.eq.s32.totalorder %s26, 1
      %p203 = por %p201, %p202
      %p205 = scmp.ne.s32.totalorder %s188, %s204
      %p206 = scmp.eq.s32.totalorder %s26, 0
      %p207 = por %p205, %p206
      %s208 = ssub.s32 %s27, %s39
      %s209 = ssub.s32 %s28, %s35
      %s210 = sor.u32 %s208, %s209
      %p211 = scmp.eq.s32.totalorder %s210, 0
      %s213 = sadd.s32 %s212, 1
      %s214 = scalar_select %p211, %s212, %s213
      %p217 = pneg %p211
      %p218 = scmp.eq.s32.totalorder %s20, 1
      %p219 = por %p217, %p218
      %p220 = scmp.ne.s32.totalorder %s212, %s215
      %p221 = scmp.eq.s32.totalorder %s20, 0
      %p222 = por %p220, %p221
      %p223 = scmp.ne.s32.totalorder %s212, %s215
      %p224 = scmp.eq.s32.totalorder %s25, 1
      %p225 = por %p223, %p224
      %p226 = scmp.ne.s32.totalorder %s215, %s216
      %p227 = scmp.eq.s32.totalorder %s25, 0
      %p228 = por %p226, %p227
      %p229 = scmp.ne.s32.totalorder %s215, %s216
      %p230 = scmp.eq.s32.totalorder %s26, 1
      %p231 = por %p229, %p230
      %p233 = scmp.ne.s32.totalorder %s216, %s232
      %p234 = scmp.eq.s32.totalorder %s26, 0
      %p235 = por %p233, %p234
      %p236 = scmp.le.s32.totalorder 1, %s20
      %p237 = scmp.lt.s32.totalorder %s20, 3
      %p238 = pnand %p236, %p237
      %p239 = pneg %p238
      // Predicated region
      $region9: #{tpu_custom_call.1} parent=5 // pred_check
        _
      $region10: #{tpu_custom_call.1} parent=5 // pred_check_branch
        %241 = sbr.rel (%p238) target = $region12
      $region11: #{tpu_custom_call.1} parent=5 // pred_region
        %s242 = ssub.s32 %s20, 1
        // Predicated region
        $region13: #{tpu_custom_call.1} parent=11 // pred_check
          %p243 = pneg %p109
        $region14: #{tpu_custom_call.1} parent=11 // pred_check_branch
          %245 = sbr.rel (%p243) target = $region16
        $region15: #{tpu_custom_call.1} parent=11 // pred_region
          _
        $region16: #{tpu_custom_call.1} parent=11 // pred_fallthru
          _
        // Predicated region
        $region17: #{tpu_custom_call.1} parent=11 // pred_check
          %p246 = pneg %p130
        $region18: #{tpu_custom_call.1} parent=11 // pred_check_branch
          %248 = sbr.rel (%p246) target = $region20
        $region19: #{tpu_custom_call.1} parent=11 // pred_region
          _
        $region20: #{tpu_custom_call.1} parent=11 // pred_fallthru
          _
        // Predicated region
        $region21: #{tpu_custom_call.1} parent=11 // pred_check
          %p249 = pneg %p151
        $region22: #{tpu_custom_call.1} parent=11 // pred_check_branch
          %251 = sbr.rel (%p249) target = $region24
        $region23: #{tpu_custom_call.1} parent=11 // pred_region
          _
        $region24: #{tpu_custom_call.1} parent=11 // pred_fallthru
          _
        // Predicated region
        $region25: #{tpu_custom_call.1} parent=11 // pred_check
          %p252 = pneg %p172
        $region26: #{tpu_custom_call.1} parent=11 // pred_check_branch
          %254 = sbr.rel (%p252) target = $region28
        $region27: #{tpu_custom_call.1} parent=11 // pred_region
          _
        $region28: #{tpu_custom_call.1} parent=11 // pred_fallthru
          _
      $region12: #{tpu_custom_call.1} parent=5 // pred_fallthru
        _
      %p255 = scmp.lt.s32.totalorder %s20, 2
      // Predicated region
      $region29: #{tpu_custom_call.1} parent=5 // pred_check
        %p256 = pneg %p255
      $region30: #{tpu_custom_call.1} parent=5 // pred_check_branch
        %258 = sbr.rel (%p256) target = $region32
      $region31: #{tpu_custom_call.1} parent=5 // pred_region
        // Predicated region
        $region33: #{tpu_custom_call.1} parent=31 // pred_check
          %p259 = pneg %p54
        $region34: #{tpu_custom_call.1} parent=31 // pred_check_branch
          %261 = sbr.rel (%p259) target = $region36
        $region35: #{tpu_custom_call.1} parent=31 // pred_region
          %p262 = scmp.lt.s32.totalorder %s27, 1
          %s263 = scalar_select %p262, %s27, 1
          %p264 = scmp.lt.s32.totalorder %s28, 0
          %s265 = scalar_select %p264, %s28, 0
          %s266 = sadd.s32 %s265, %s263
          %s267 = smul.addr %s266, 4
          %s268 = scalar_lea.vmem %s0, %s267
        $region36: #{tpu_custom_call.1} parent=31 // pred_fallthru
          _
        // Predicated region
        $region37: #{tpu_custom_call.1} parent=31 // pred_check
          %p269 = pneg %p82
        $region38: #{tpu_custom_call.1} parent=31 // pred_check_branch
          %271 = sbr.rel (%p269) target = $region40
        $region39: #{tpu_custom_call.1} parent=31 // pred_region
          %p272 = scmp.lt.s32.totalorder %s27, 1
          %s273 = scalar_select %p272, %s27, 1
          %p274 = scmp.lt.s32.totalorder %s28, 0
          %s275 = scalar_select %p274, %s28, 0
          %s276 = sadd.s32 %s275, %s273
          %s277 = smul.addr %s276, 4
          %s278 = scalar_lea.vmem %s1, %s277
        $region40: #{tpu_custom_call.1} parent=31 // pred_fallthru
          _
      $region32: #{tpu_custom_call.1} parent=5 // pred_fallthru
        _
      %p279 = scmp.le.s32.totalorder 1, %s20
      %p280 = scmp.lt.s32.totalorder %s20, 3
      %p281 = pnand %p279, %p280
      %p282 = pneg %p281
      // Predicated region
      $region41: #{tpu_custom_call.1} parent=5 // pred_check
        _
      $region42: #{tpu_custom_call.1} parent=5 // pred_check_branch
        %284 = sbr.rel (%p281) target = $region44
      $region43: #{tpu_custom_call.1} parent=5 // pred_region
        %s285 = ssub.s32 %s20, 1
        %p286 = scmp.lt.s32.totalorder %s29, 1
        %s287 = scalar_select %p286, %s29, 1
        %p288 = scmp.lt.s32.totalorder %s30, 0
        %s289 = scalar_select %p288, %s30, 0
        %s290 = sadd.s32 %s289, %s287
        %s291 = smul.addr %s290, 4
        %s292 = scalar_lea.vmem %s0, %s291
        %p293 = pneg %p60
        %p294 = pneg %p57
        %p295 = scmp.lt.s32.totalorder %s29, 1
        %s296 = scalar_select %p295, %s29, 1
        %p297 = scmp.lt.s32.totalorder %s30, 0
        %s298 = scalar_select %p297, %s30, 0
        %s299 = sadd.s32 %s298, %s296
        %s300 = smul.addr %s299, 4
        %s301 = scalar_lea.vmem %s1, %s300
        %p302 = pneg %p88
        %p303 = pneg %p85
        %p304 = pneg %p109
        %p305 = pneg %p106
        %p306 = pneg %p130
        %p307 = pneg %p127
        %p308 = pneg %p151
        %p309 = pneg %p148
        %p310 = pneg %p172
        %p311 = pneg %p169
        %p312 = pneg %p200
        %p313 = pneg %p197
        %s314 = sand.u32 %s187, 1
        %s315 = scalar_lea.sflag [#allocation3], %s314
        %s316 = sand.u32 %s187, 1
        %s317 = smul.addr %s316, 4
        %s318 = scalar_lea.vmem [#allocation2], %s317
        %p319 = pneg %p228
        %p320 = pneg %p225
        %s321 = sand.u32 %s215, 1
        %s322 = scalar_lea.sflag [#allocation5], %s321
        %s323 = sand.u32 %s215, 1
        %s324 = smul.addr %s323, 4
        %s325 = scalar_lea.vmem [#allocation4], %s324
        %p326 = scmp.lt.s32.totalorder %s29, 1
        %s327 = scalar_select %p326, %s29, 1
        %p328 = scmp.lt.s32.totalorder %s30, 0
        %s329 = scalar_select %p328, %s30, 0
        %s330 = sadd.s32 %s329, %s327
        %s331 = smul.addr %s330, 4
        %s332 = scalar_lea.vmem %s0, %s331
        %p333 = scmp.lt.s32.totalorder %s29, 1
        %s334 = scalar_select %p333, %s29, 1
        %p335 = scmp.lt.s32.totalorder %s30, 0
        %s336 = scalar_select %p335, %s30, 0
        %s337 = sadd.s32 %s336, %s334
        %s338 = smul.addr %s337, 4
        %s339 = scalar_lea.vmem %s1, %s338
        %v340 = vld [vmem:[%s332] sm:$0xf]
        %v341 = vld [vmem:[%s339] sm:$0xf]
        %343 = vrot.lane.b32.xlu0 %v340, 2
        %v344 = vpop.permute.xlu0 %343
        %vm346 = vcmask 15360
        %v347 = vsel %vm346, %v341, %v344
        %348 = vrot.lane.b32.xlu0 %v340, 126
        %v349 = vpop.permute.xlu0 %348
        %352 = vrot.lane.b32.xlu0 %v341, 12
        %v353 = vpop.permute.xlu0 %352
        %vm355 = vcmask 113664
        %v356 = vsel %vm355, %v349, %v353
        %v357 = vrot.slane %v340, 4
        %vm359 = vcmask 1043456
        %v360 = vsel %vm359, %v347, %v357
        %v361 = vld [vmem:[%s2] sm:$0xff]
        %v362 = vld [vmem:[%s3] sm:$0xff]
        %364 = vset.pattern.permute.xlu0 0
        %365 = vperm.xlu0 %364, %v362
        %v366 = vpop.permute.xlu0 %365
        %vm368 = vcmask 97280
        %v370 = vsel %vm368, %v361, 0
        %v373 = vsel %vm359, %v356, 0
        %375 = vmatprep.subr.mxu0 0.0
        %376 = vmatpush1.msra.mxu0 %v360
        %377 = vmatprep.subr.mxu0 0.0
        %378 = vmatpush1.msra.mxu0 %v373
        %379 = vmatprep.subr.mxu0 0.0
        %380 = vmatpush1.msra.mxu0 0.0
        %381 = vmatprep.subr.mxu0 0.0
        %382 = vmatpush1.msra.mxu0 0.0
        %383 = vmatprep.subr.mxu0 0.0
        %384 = vmatpush1.msra.mxu0 0.0
        %385 = vmatprep.subr.mxu0 0.0
        %386 = vmatpush1.msra.mxu0 0.0
        %387 = vmatprep.subr.mxu0 0.0
        %388 = vmatpush1.msra.mxu0 0.0
        %389 = vmatprep.subr.mxu0 0.0
        %390 = vmatpush1.msra.mxu0 0.0
        %391 = vmatprep.subr.mxu0 0.0
        %392 = vmatpush1.msra.mxu0 0.0
        %393 = vmatprep.subr.mxu0 0.0
        %394 = vmatpush1.msra.mxu0 0.0
        %395 = vmatprep.subr.mxu0 0.0
        %396 = vmatpush1.msra.mxu0 0.0
        %397 = vmatprep.subr.mxu0 0.0
        %398 = vmatpush1.msra.mxu0 0.0
        %399 = vmatprep.subr.mxu0 0.0
        %400 = vmatpush1.msra.mxu0 0.0
        %401 = vmatprep.subr.mxu0 0.0
        %402 = vmatpush1.msra.mxu0 0.0
        %403 = vmatprep.subr.mxu0 0.0
        %404 = vmatpush1.msra.mxu0 0.0
        %405 = vmatprep.subr.mxu0 0.0
        %406 = vmatpush1.msra.mxu0 0.0
        %407 = vmatprep.subr.mxu0 0.0
        %408 = vmatpush1.msra.mxu0 0.0
        %409 = vmatprep.subr.mxu0 0.0
        %410 = vmatpush1.msra.mxu0 0.0
        %411 = vmatprep.subr.mxu0 0.0
        %412 = vmatpush1.msra.mxu0 0.0
        %413 = vmatprep.subr.mxu0 0.0
        %414 = vmatpush1.msra.mxu0 0.0
        %415 = vmatprep.subr.mxu0 0.0
        %416 = vmatpush1.msra.mxu0 0.0
        %417 = vmatprep.subr.mxu0 0.0
        %418 = vmatpush1.msra.mxu0 0.0
        %419 = vmatprep.subr.mxu0 0.0
        %420 = vmatpush1.msra.mxu0 0.0
        %421 = vmatprep.subr.mxu0 0.0
        %422 = vmatpush1.msra.mxu0 0.0
        %423 = vmatprep.subr.mxu0 0.0
        %424 = vmatpush1.msra.mxu0 0.0
        %425 = vmatprep.subr.mxu0 0.0
        %426 = vmatpush1.msra.mxu0 0.0
        %427 = vmatprep.subr.mxu0 0.0
        %428 = vmatpush1.msra.mxu0 0.0
        %429 = vmatprep.subr.mxu0 0.0
        %430 = vmatpush1.msra.mxu0 0.0
        %431 = vmatprep.subr.mxu0 0.0
        %432 = vmatpush1.msra.mxu0 0.0
        %433 = vmatprep.subr.mxu0 0.0
        %434 = vmatpush1.msra.mxu0 0.0
        %435 = vmatprep.subr.mxu0 0.0
        %436 = vmatpush1.msra.mxu0 0.0
        %437 = vmatprep.subr.mxu0 0.0
        %438 = vmatpush1.msra.mxu0 0.0
        %439 = vmatprep.mubr.f32.mxu0 0.0
        %440 = vmatmul.mubr.f32.gmra.mrb[0].mxu0 %v370
        %v441 = vpop.f32.mrb[0].mxu0
        %v442 = vadd.f32 %v366, %v441
        %v443 = vpop.f32.mrb[0].mxu0
        %444 = vdwg.mxu0
        %v445 = vxor.u32 %v442, 2147483648
        %v446 = vmul.f32 %v445, 1.442695
        %v447 = vpow.pop %v446
        %v448 = vadd.f32 %v447, 1.0
        %v449 = vrcp.pop %v448
        %v450 = vmul.f32 1.0, %v449
        %v451 = vtanh.pop %v442
        %v453 = vrot.slane %v451, 4
        %v455 = vmul.f32 %v450, %v453
        %v456 = vld [vmem:[%s4] sm:$0xff]
        %v457 = vld [vmem:[%s5] sm:$0xff]
        %459 = vset.pattern.permute.xlu0 0
        %460 = vperm.xlu0 %459, %v457
        %v461 = vpop.permute.xlu0 %460
        %vm463 = vcmask 31744
        %v465 = vsel %vm463, %v456, 0
        %v468 = vsel %vm359, %v455, 0
        %470 = vmatprep.subr.mxu0 0.0
        %471 = vmatpush1.msra.mxu0 %v468
        %472 = vmatprep.subr.mxu0 0.0
        %473 = vmatpush1.msra.mxu0 0.0
        %474 = vmatprep.subr.mxu0 0.0
        %475 = vmatpush1.msra.mxu0 0.0
        %476 = vmatprep.subr.mxu0 0.0
        %477 = vmatpush1.msra.mxu0 0.0
        %478 = vmatprep.subr.mxu0 0.0
        %479 = vmatpush1.msra.mxu0 0.0
        %480 = vmatprep.subr.mxu0 0.0
        %481 = vmatpush1.msra.mxu0 0.0
        %482 = vmatprep.subr.mxu0 0.0
        %483 = vmatpush1.msra.mxu0 0.0
        %484 = vmatprep.subr.mxu0 0.0
        %485 = vmatpush1.msra.mxu0 0.0
        %486 = vmatprep.subr.mxu0 0.0
        %487 = vmatpush1.msra.mxu0 0.0
        %488 = vmatprep.subr.mxu0 0.0
        %489 = vmatpush1.msra.mxu0 0.0
        %490 = vmatprep.subr.mxu0 0.0
        %491 = vmatpush1.msra.mxu0 0.0
        %492 = vmatprep.subr.mxu0 0.0
        %493 = vmatpush1.msra.mxu0 0.0
        %494 = vmatprep.subr.mxu0 0.0
        %495 = vmatpush1.msra.mxu0 0.0
        %496 = vmatprep.subr.mxu0 0.0
        %497 = vmatpush1.msra.mxu0 0.0
        %498 = vmatprep.subr.mxu0 0.0
        %499 = vmatpush1.msra.mxu0 0.0
        %500 = vmatprep.subr.mxu0 0.0
        %501 = vmatpush1.msra.mxu0 0.0
        %502 = vmatprep.subr.mxu0 0.0
        %503 = vmatpush1.msra.mxu0 0.0
        %504 = vmatprep.subr.mxu0 0.0
        %505 = vmatpush1.msra.mxu0 0.0
        %506 = vmatprep.subr.mxu0 0.0
        %507 = vmatpush1.msra.mxu0 0.0
        %508 = vmatprep.subr.mxu0 0.0
        %509 = vmatpush1.msra.mxu0 0.0
        %510 = vmatprep.subr.mxu0 0.0
        %511 = vmatpush1.msra.mxu0 0.0
        %512 = vmatprep.subr.mxu0 0.0
        %513 = vmatpush1.msra.mxu0 0.0
        %514 = vmatprep.subr.mxu0 0.0
        %515 = vmatpush1.msra.mxu0 0.0
        %516 = vmatprep.subr.mxu0 0.0
        %517 = vmatpush1.msra.mxu0 0.0
        %518 = vmatprep.subr.mxu0 0.0
        %519 = vmatpush1.msra.mxu0 0.0
        %520 = vmatprep.subr.mxu0 0.0
        %521 = vmatpush1.msra.mxu0 0.0
        %522 = vmatprep.subr.mxu0 0.0
        %523 = vmatpush1.msra.mxu0 0.0
        %524 = vmatprep.subr.mxu0 0.0
        %525 = vmatpush1.msra.mxu0 0.0
        %526 = vmatprep.subr.mxu0 0.0
        %527 = vmatpush1.msra.mxu0 0.0
        %528 = vmatprep.subr.mxu0 0.0
        %529 = vmatpush1.msra.mxu0 0.0
        %530 = vmatprep.subr.mxu0 0.0
        %531 = vmatpush1.msra.mxu0 0.0
        %532 = vmatprep.subr.mxu0 0.0
        %533 = vmatpush1.msra.mxu0 0.0
        %534 = vmatprep.mubr.f32.mxu0 0.0
        %535 = vmatmul.mubr.f32.gmra.mrb[0].mxu0 %v465
        %v536 = vpop.f32.mrb[0].mxu0
        %v537 = vadd.f32 %v461, %v536
        %v538 = vpop.f32.mrb[0].mxu0
        %539 = vdwg.mxu0
        %v540 = vadd.f32 %v340, %v537
        %v541 = vmul.f32 %v540, 0.70710677
        %vm542 = vcmask 125952
        %543 = vst.msk [vmem:[%s318] sm:$0xf] %vm542, %v541
        %vm544 = vcmask 130052
        %545 = vst.msk [vmem:[%s325 - $0x4] sm:$0xf0] %vm544, %v537
        %s546 = sand.u32 %s187, 1
        %s547 = scalar_lea.sflag [#allocation3], %s546
        %s548 = sand.u32 %s187, 1
        %s549 = smul.addr %s548, 4
        %s550 = scalar_lea.vmem [#allocation2], %s549
        %s551 = sand.u32 %s215, 1
        %s552 = scalar_lea.sflag [#allocation5], %s551
        %s553 = sand.u32 %s215, 1
        %s554 = smul.addr %s553, 4
        %s555 = scalar_lea.vmem [#allocation4], %s554
        // Predicated region
        $region45: #{tpu_custom_call.1} parent=43 // pred_check
          %p556 = pneg %p197
        $region46: #{tpu_custom_call.1} parent=43 // pred_check_branch
          %558 = sbr.rel (%p556) target = $region48
        $region47: #{tpu_custom_call.1} parent=43 // pred_region
          %s560 = ssub.s32 64, 64
          %561 = vsyncadd %s547, %s560
          %s562 = sadd.s32 %s30, %s29
          %s563 = smul.addr %s562, 64
          %s564 = scalar_lea.hbm %s6, %s563
          %s566 = sshll.u32 %s550, 4
          %s567 = int_to_ptr.vmem [resolvable:$true] %s566
          %569 = dma.vmem_to_hbm [thread:$0]  %s567, 64, %s564, %s547
        $region48: #{tpu_custom_call.1} parent=43 // pred_fallthru
          _
        // Predicated region
        $region49: #{tpu_custom_call.1} parent=43 // pred_check
          %p570 = pneg %p225
        $region50: #{tpu_custom_call.1} parent=43 // pred_check_branch
          %572 = sbr.rel (%p570) target = $region52
        $region51: #{tpu_custom_call.1} parent=43 // pred_region
          %s574 = ssub.s32 64, 64
          %575 = vsyncadd %s552, %s574
          %s576 = sadd.s32 %s30, %s29
          %s577 = smul.addr %s576, 64
          %s578 = scalar_lea.hbm %s7, %s577
          %s580 = sshll.u32 %s555, 4
          %s581 = int_to_ptr.vmem [resolvable:$true] %s580
          %583 = dma.vmem_to_hbm [thread:$0]  %s581, 64, %s578, %s552
        $region52: #{tpu_custom_call.1} parent=43 // pred_fallthru
          _
      $region44: #{tpu_custom_call.1} parent=5 // pred_fallthru
        _
      %p584 = scmp.le.s32.totalorder 2, %s20
      // Predicated region
      $region53: #{tpu_custom_call.1} parent=5 // pred_check
        %p585 = pneg %p584
      $region54: #{tpu_custom_call.1} parent=5 // pred_check_branch
        %587 = sbr.rel (%p585) target = $region56
      $region55: #{tpu_custom_call.1} parent=5 // pred_region
        %s588 = ssub.s32 %s20, 2
        // Predicated region
        $region57: #{tpu_custom_call.1} parent=55 // pred_check
          %p589 = pneg %p203
        $region58: #{tpu_custom_call.1} parent=55 // pred_check_branch
          %591 = sbr.rel (%p589) target = $region60
        $region59: #{tpu_custom_call.1} parent=55 // pred_region
          %s592 = sand.u32 %s188, 1
          %s593 = scalar_lea.sflag [#allocation3], %s592
          %s594 = sand.u32 %s188, 1
          %s595 = smul.addr %s594, 4
          %s596 = scalar_lea.vmem [#allocation2], %s595
          %597 = dma.done %s593, 64
        $region60: #{tpu_custom_call.1} parent=55 // pred_fallthru
          _
        // Predicated region
        $region61: #{tpu_custom_call.1} parent=55 // pred_check
          %p598 = pneg %p231
        $region62: #{tpu_custom_call.1} parent=55 // pred_check_branch
          %600 = sbr.rel (%p598) target = $region64
        $region63: #{tpu_custom_call.1} parent=55 // pred_region
          %s601 = sand.u32 %s216, 1
          %s602 = scalar_lea.sflag [#allocation5], %s601
          %s603 = sand.u32 %s216, 1
          %s604 = smul.addr %s603, 4
          %s605 = scalar_lea.vmem [#allocation4], %s604
          %606 = dma.done %s602, 64
        $region64: #{tpu_custom_call.1} parent=55 // pred_fallthru
          _
      $region56: #{tpu_custom_call.1} parent=5 // pred_fallthru
        _
    $region6: #{tpu_custom_call.1} parent=1 // loop_footer
      %s24 = sadd.s32 1, %s20
    $region7: #{tpu_custom_call.1} parent=1 // loop_footer_branch
      %19 = sbr.rel target = $region3
    $region8: #{tpu_custom_call.1} parent=1 // loop_exit
      _
    %607 = vsyncpa [#allocation3], 1
    %s608 = scalar_lea.sflag [#allocation3], 1
    %609 = vsyncpa %s608, 1
    %610 = vsyncpa [#allocation5], 1
    %s611 = scalar_lea.sflag [#allocation5], 1
    %612 = vsyncpa %s611, 1

</llo_original>
